<compile_context>
chip_gen: v7x
topology: tpu7x:2x2x1
jax: 0.10.0
libtpu: 0.0.40
codegen_flags: <defaults>
</compile_context>

<pallas_src>
import functools

import numpy as np
import jax
import jax.numpy as jnp
from jax.experimental import pallas as pl
from jax.experimental.pallas import tpu as pltpu

_LANE = 128
_SUBLANE = 8


def _round_up(x, m):
    return (x + m - 1) // m * m


def _fc_kernel(x_ref,
               w1_ref, b1_ref,
               w2_ref, b2_ref,
               w3_ref, b3_ref,
               w4_ref, b4_ref,
               o_ref):
    """Fused MLP: relu(relu(relu(x@W1+b1)@W2+b2)@W3+b3)@W4+b4 on one batch tile."""
    cdt = w1_ref.dtype  # MXU input dtype (bf16 or f32); accumulation is f32.

    h = jnp.dot(x_ref[...].astype(cdt), w1_ref[...],
                preferred_element_type=jnp.float32) + b1_ref[...]
    h = jnp.maximum(h, 0.0)

    h = jnp.dot(h.astype(cdt), w2_ref[...],
                preferred_element_type=jnp.float32) + b2_ref[...]
    h = jnp.maximum(h, 0.0)

    h = jnp.dot(h.astype(cdt), w3_ref[...],
                preferred_element_type=jnp.float32) + b3_ref[...]
    h = jnp.maximum(h, 0.0)

    out = jnp.dot(h.astype(cdt), w4_ref[...],
                  preferred_element_type=jnp.float32) + b4_ref[...]
    o_ref[...] = out.astype(o_ref.dtype)


def prepare_params(params, compute_dtype=jnp.bfloat16):
    """One-time (outside jit) weight prep.

    Hidden-layer out_features (128/64/32) are zero-padded to 128 lanes so the
    kernel intermediates are lane-dense; each next layer's in_features is
    padded to match.  The FINAL layer's out_features is left unpadded so the
    HBM writeback is only out_dim lanes wide.  Weights are cast to
    `compute_dtype` (bf16 by default for MXU); biases stay f32.
    Zero padding leaves the math unchanged.
    """
    prepared = {}
    prev_out_p = params["w1"].shape[0]  # cond_dim: input K is NOT padded.
    for layer in range(1, 5):
        w = jnp.asarray(params[f"w{layer}"])
        b = jnp.asarray(params[f"b{layer}"]).reshape(1, -1)
        fi, fo = w.shape
        fo_p = _round_up(fo, _LANE) if layer < 4 else fo
        w = jnp.pad(w, ((0, prev_out_p - fi), (0, fo_p - fo))).astype(compute_dtype)
        b = jnp.pad(b, ((0, 0), (0, fo_p - fo))).astype(jnp.float32)
        prepared[f"w{layer}"] = w
        prepared[f"b{layer}"] = b
        prev_out_p = fo_p
    return prepared


@functools.partial(
    jax.jit, static_argnames=("block_b", "out_dtype", "single_buffer_weights"))
def fc_model_forward(condition, prepared, *, block_b=4096,
                     out_dtype=jnp.float32, single_buffer_weights=True):
    """condition: (B, condition_dim) f32.  prepared: output of prepare_params."""
    B, cond_dim = condition.shape
    assert prepared["w1"].shape[0] == cond_dim
    out_dim = prepared["w4"].shape[1]
    out_itemsize = np.dtype(out_dtype).itemsize

    # ---- batch-tile selection (all static / trace-time Python) ----
    try:
        vmem_cap = int(pltpu.get_tpu_info().vmem_capacity_bytes)
    except Exception:
        vmem_cap = 64 << 20  # conservative: v7x per-TensorCore VMEM

    block_b = max(_SUBLANE, min(int(block_b), 8192))
    block_b = min(block_b, _round_up(B, _SUBLANE))
    block_b = _round_up(block_b, _SUBLANE)
    # Per-row VMEM bytes: double-buffered x + out blocks, ~4 lane-wide f32
    # intermediates; keep total under ~1/3 of VMEM (weights + slack elsewhere).
    row_bytes = 2 * cond_dim * 4 + 2 * out_dim * out_itemsize + 4 * _LANE * 4
    max_rows = max(_SUBLANE, ((vmem_cap // 3) // row_bytes) // _SUBLANE * _SUBLANE)
    block_b = min(block_b, max_rows)

    grid = (pl.cdiv(B, block_b),)

    # ---- vmem_limit_bytes from the actual footprint ----
    weight_bytes = sum(int(v.size) * v.dtype.itemsize for v in prepared.values())
    vmem_need = (2 * block_b * cond_dim * 4
                 + 2 * block_b * out_dim * out_itemsize
                 + 4 * block_b * _LANE * 4
                 + weight_bytes * (1 if single_buffer_weights else 2))
    vmem_limit = int(min(max(vmem_need * 3 // 2, 32 << 20), 64 << 20))

    x_map = lambda i: (i, 0)
    w_map = lambda i: (0, 0)  # constant -> weights stay VMEM-resident, no re-DMA

    def _const_spec(shape):
        if single_buffer_weights:
            # Constant index map: one buffer is enough.
            return pl.BlockSpec(shape, w_map, pipeline_mode=pl.Buffered(1))
        return pl.BlockSpec(shape, w_map)

    in_specs = [pl.BlockSpec((block_b, cond_dim), x_map)]
    args = [condition]
    for layer in range(1, 5):
        w = prepared[f"w{layer}"]
        b = prepared[f"b{layer}"]
        in_specs.append(_const_spec(w.shape))
        in_specs.append(_const_spec(b.shape))
        args.append(w)
        args.append(b)

    out = pl.pallas_call(
        _fc_kernel,
        out_shape=jax.ShapeDtypeStruct((B, out_dim), out_dtype),
        grid_spec=pltpu.PrefetchScalarGridSpec(
            num_scalar_prefetch=0,
            grid=grid,
            in_specs=in_specs,
            out_specs=pl.BlockSpec((block_b, out_dim), x_map),
        ),
        compiler_params=pltpu.CompilerParams(
            dimension_semantics=("parallel",),
            vmem_limit_bytes=vmem_limit),
    )(*args)

    return out


def init_fc_params(key, input_dim, condition_dim, hidden_dim=128):
    """Deterministic PyTorch-style (uniform +/- 1/sqrt(fan_in)) init, weights as (in, out)."""
    dims = [condition_dim, hidden_dim, hidden_dim // 2, hidden_dim // 4, input_dim]
    params = {}
    keys = jax.random.split(key, 2 * (len(dims) - 1))
    for layer in range(len(dims) - 1):
        fan_in, fan_out = dims[layer], dims[layer + 1]
        bound = 1.0 / jnp.sqrt(jnp.float32(fan_in))
        wk, bk = keys[2 * layer], keys[2 * layer + 1]
        params[f"w{layer + 1}"] = jax.random.uniform(
            wk, (fan_in, fan_out), jnp.float32, -bound, bound)
        params[f"b{layer + 1}"] = jax.random.uniform(
            bk, (1, fan_out), jnp.float32, -bound, bound)
    return params


def fc_model_reference(condition, params):
    """Plain-JAX reference for correctness checking."""
    h = condition
    for layer in range(1, 5):
        h = h @ params[f"w{layer}"] + params[f"b{layer}"]
        if layer < 4:
            h = jnp.maximum(h, 0.0)
    return h


if __name__ == "__main__":
    key = jax.random.PRNGKey(0)
    k_params, k_x1, k_x2 = jax.random.split(key, 3)

    # Small synthetic shapes consistent with the module:
    # condition = hstack([r, alpha, beta]) -> condition_dim; targets -> input_dim.
    condition_dim = 24   # e.g. 8 + 8 + 8 (r, alpha, beta)
    input_dim = 16
    hidden_dim = 128
    params = init_fc_params(k_params, input_dim, condition_dim, hidden_dim)

    # Pad / cast weights ONCE, outside the jitted forward.
    prep_f32 = prepare_params(params, compute_dtype=jnp.float32)
    prep_bf16 = prepare_params(params)  # default: bf16 MXU inputs

    # 1) Small batch, f32 compute (tight tolerance).  The first call probes
    #    whether single-buffered weight specs (pl.Buffered(1)) are supported
    #    and falls back to default double-buffering if not.
    batch = 8
    condition = jax.random.normal(k_x1, (batch, condition_dim), jnp.float32)
    ref = fc_model_reference(condition, params)
    kwargs = {}
    try:
        out = jax.block_until_ready(fc_model_forward(condition, prep_f32, **kwargs))
    except Exception:
        kwargs = {"single_buffer_weights": False}
        out = jax.block_until_ready(fc_model_forward(condition, prep_f32, **kwargs))
    assert out.shape == (batch, input_dim)
    assert jnp.allclose(out, ref, atol=1e-4, rtol=1e-4)

    # 2) Larger batch with a small block_b to exercise a multi-block grid and
    #    a partial last block, f32 compute.
    batch2 = 300
    condition2 = jax.random.normal(k_x2, (batch2, condition_dim), jnp.float32)
    ref2 = fc_model_reference(condition2, params)
    out2 = jax.block_until_ready(
        fc_model_forward(condition2, prep_f32, block_b=128, **kwargs))
    assert out2.shape == (batch2, input_dim)
    assert jnp.allclose(out2, ref2, atol=1e-4, rtol=1e-4)

    # 3) Default bf16 MXU inputs (f32 accumulation) — looser tolerance.
    out3 = jax.block_until_ready(fc_model_forward(condition2, prep_bf16, **kwargs))
    assert out3.shape == (batch2, input_dim)
    max_ref = float(jnp.max(jnp.abs(ref2)))
    assert float(jnp.max(jnp.abs(out3 - ref2))) < 5e-2 * (1.0 + max_ref)

    print("KERNEL_OK")
</pallas_src>

<mosaic_0001>
module attributes {stable_mosaic.version = 11 : i64} {
  func.func @_fc_kernel(%arg0: i32, %arg1: memref<8x24xf32, #tpu.memory_space<vmem>>, %arg2: memref<24x128xf32, #tpu.memory_space<vmem>>, %arg3: memref<1x128xf32, #tpu.memory_space<vmem>>, %arg4: memref<128x128xf32, #tpu.memory_space<vmem>>, %arg5: memref<1x128xf32, #tpu.memory_space<vmem>>, %arg6: memref<128x128xf32, #tpu.memory_space<vmem>>, %arg7: memref<1x128xf32, #tpu.memory_space<vmem>>, %arg8: memref<128x16xf32, #tpu.memory_space<vmem>>, %arg9: memref<1x16xf32, #tpu.memory_space<vmem>>, %arg10: memref<8x16xf32, #tpu.memory_space<vmem>>) attributes {dimension_semantics = [#tpu.dimension_semantics<parallel>], iteration_bounds = array<i64: 1>, scalar_prefetch = 0 : i64, scratch_operands = 0 : i64, tpu.core_type = #tpu.core_type<tc>, window_params = [{transform_indices = @transform_0, window_bounds = array<i64: 8, 24>}, {pipeline_mode = #tpu.pipeline_mode<synchronous>, transform_indices = @transform_1, window_bounds = array<i64: 24, 128>}, {pipeline_mode = #tpu.pipeline_mode<synchronous>, transform_indices = @transform_2, window_bounds = array<i64: 1, 128>}, {pipeline_mode = #tpu.pipeline_mode<synchronous>, transform_indices = @transform_3, window_bounds = array<i64: 128, 128>}, {pipeline_mode = #tpu.pipeline_mode<synchronous>, transform_indices = @transform_4, window_bounds = array<i64: 1, 128>}, {pipeline_mode = #tpu.pipeline_mode<synchronous>, transform_indices = @transform_5, window_bounds = array<i64: 128, 128>}, {pipeline_mode = #tpu.pipeline_mode<synchronous>, transform_indices = @transform_6, window_bounds = array<i64: 1, 128>}, {pipeline_mode = #tpu.pipeline_mode<synchronous>, transform_indices = @transform_7, window_bounds = array<i64: 128, 16>}, {pipeline_mode = #tpu.pipeline_mode<synchronous>, transform_indices = @transform_8, window_bounds = array<i64: 1, 16>}, {transform_indices = @transform_9, window_bounds = array<i64: 8, 16>}]} {
    %c0 = arith.constant 0 : index
    %c0_0 = arith.constant 0 : index
    %0 = vector.load %arg1[%c0, %c0_0] : memref<8x24xf32, #tpu.memory_space<vmem>>, vector<8x24xf32>
    %c0_1 = arith.constant 0 : index
    %c0_2 = arith.constant 0 : index
    %1 = vector.load %arg2[%c0_1, %c0_2] : memref<24x128xf32, #tpu.memory_space<vmem>>, vector<24x128xf32>
    %cst = arith.constant dense<0.000000e+00> : vector<8x128xf32>
    %2 = tpu.matmul %0, %1, %cst {dimension_numbers = #tpu.dot_dimension_numbers<[1], [0], [0], [1], [0, 0, 1, 1], [], []>} : vector<8x24xf32>, vector<24x128xf32>, vector<8x128xf32> -> vector<8x128xf32>
    %c0_3 = arith.constant 0 : index
    %c0_4 = arith.constant 0 : index
    %3 = vector.load %arg3[%c0_3, %c0_4] : memref<1x128xf32, #tpu.memory_space<vmem>>, vector<1x128xf32>
    %4 = vector.broadcast %3 : vector<1x128xf32> to vector<8x128xf32>
    %5 = arith.addf %2, %4 : vector<8x128xf32>
    %cst_5 = arith.constant 0.000000e+00 : f32
    %6 = vector.broadcast %cst_5 : f32 to vector<8x128xf32>
    %7 = arith.maximumf %5, %6 : vector<8x128xf32>
    %c0_6 = arith.constant 0 : index
    %c0_7 = arith.constant 0 : index
    %8 = vector.load %arg4[%c0_6, %c0_7] : memref<128x128xf32, #tpu.memory_space<vmem>>, vector<128x128xf32>
    %cst_8 = arith.constant dense<0.000000e+00> : vector<8x128xf32>
    %9 = tpu.matmul %7, %8, %cst_8 {dimension_numbers = #tpu.dot_dimension_numbers<[1], [0], [0], [1], [0, 0, 1, 1], [], []>} : vector<8x128xf32>, vector<128x128xf32>, vector<8x128xf32> -> vector<8x128xf32>
    %c0_9 = arith.constant 0 : index
    %c0_10 = arith.constant 0 : index
    %10 = vector.load %arg5[%c0_9, %c0_10] : memref<1x128xf32, #tpu.memory_space<vmem>>, vector<1x128xf32>
    %11 = vector.broadcast %10 : vector<1x128xf32> to vector<8x128xf32>
    %12 = arith.addf %9, %11 : vector<8x128xf32>
    %cst_11 = arith.constant 0.000000e+00 : f32
    %13 = vector.broadcast %cst_11 : f32 to vector<8x128xf32>
    %14 = arith.maximumf %12, %13 : vector<8x128xf32>
    %c0_12 = arith.constant 0 : index
    %c0_13 = arith.constant 0 : index
    %15 = vector.load %arg6[%c0_12, %c0_13] : memref<128x128xf32, #tpu.memory_space<vmem>>, vector<128x128xf32>
    %cst_14 = arith.constant dense<0.000000e+00> : vector<8x128xf32>
    %16 = tpu.matmul %14, %15, %cst_14 {dimension_numbers = #tpu.dot_dimension_numbers<[1], [0], [0], [1], [0, 0, 1, 1], [], []>} : vector<8x128xf32>, vector<128x128xf32>, vector<8x128xf32> -> vector<8x128xf32>
    %c0_15 = arith.constant 0 : index
    %c0_16 = arith.constant 0 : index
    %17 = vector.load %arg7[%c0_15, %c0_16] : memref<1x128xf32, #tpu.memory_space<vmem>>, vector<1x128xf32>
    %18 = vector.broadcast %17 : vector<1x128xf32> to vector<8x128xf32>
    %19 = arith.addf %16, %18 : vector<8x128xf32>
    %cst_17 = arith.constant 0.000000e+00 : f32
    %20 = vector.broadcast %cst_17 : f32 to vector<8x128xf32>
    %21 = arith.maximumf %19, %20 : vector<8x128xf32>
    %c0_18 = arith.constant 0 : index
    %c0_19 = arith.constant 0 : index
    %22 = vector.load %arg8[%c0_18, %c0_19] : memref<128x16xf32, #tpu.memory_space<vmem>>, vector<128x16xf32>
    %cst_20 = arith.constant dense<0.000000e+00> : vector<8x16xf32>
    %23 = tpu.matmul %21, %22, %cst_20 {dimension_numbers = #tpu.dot_dimension_numbers<[1], [0], [0], [1], [0, 0, 1, 1], [], []>} : vector<8x128xf32>, vector<128x16xf32>, vector<8x16xf32> -> vector<8x16xf32>
    %c0_21 = arith.constant 0 : index
    %c0_22 = arith.constant 0 : index
    %24 = vector.load %arg9[%c0_21, %c0_22] : memref<1x16xf32, #tpu.memory_space<vmem>>, vector<1x16xf32>
    %25 = vector.broadcast %24 : vector<1x16xf32> to vector<8x16xf32>
    %26 = arith.addf %23, %25 : vector<8x16xf32>
    %c0_23 = arith.constant 0 : index
    %c0_24 = arith.constant 0 : index
    %27 = vector.load %arg10[%c0_23, %c0_24] : memref<8x16xf32, #tpu.memory_space<vmem>>, vector<8x16xf32>
    tpu.vector_store %arg10[%c0_23, %c0_24], %26 {strides = array<i32>} : memref<8x16xf32, #tpu.memory_space<vmem>>, vector<8x16xf32>,
    return
  }
  func.func @transform_0(%arg0: i32) -> (i32, i32) {
    %c0_i32 = arith.constant 0 : i32
    %c0_i32_0 = arith.constant 0 : i32
    return %arg0, %c0_i32 : i32, i32
  }
  func.func @transform_1(%arg0: i32) -> (i32, i32) {
    %c0_i32 = arith.constant 0 : i32
    %c0_i32_0 = arith.constant 0 : i32
    %c0_i32_1 = arith.constant 0 : i32
    return %c0_i32, %c0_i32_0 : i32, i32
  }
  func.func @transform_2(%arg0: i32) -> (i32, i32) {
    %c0_i32 = arith.constant 0 : i32
    %c0_i32_0 = arith.constant 0 : i32
    %c0_i32_1 = arith.constant 0 : i32
    return %c0_i32, %c0_i32_0 : i32, i32
  }
  func.func @transform_3(%arg0: i32) -> (i32, i32) {
    %c0_i32 = arith.constant 0 : i32
    %c0_i32_0 = arith.constant 0 : i32
    %c0_i32_1 = arith.constant 0 : i32
    return %c0_i32, %c0_i32_0 : i32, i32
  }
  func.func @transform_4(%arg0: i32) -> (i32, i32) {
    %c0_i32 = arith.constant 0 : i32
    %c0_i32_0 = arith.constant 0 : i32
    %c0_i32_1 = arith.constant 0 : i32
    return %c0_i32, %c0_i32_0 : i32, i32
  }
  func.func @transform_5(%arg0: i32) -> (i32, i32) {
    %c0_i32 = arith.constant 0 : i32
    %c0_i32_0 = arith.constant 0 : i32
    %c0_i32_1 = arith.constant 0 : i32
    return %c0_i32, %c0_i32_0 : i32, i32
  }
  func.func @transform_6(%arg0: i32) -> (i32, i32) {
    %c0_i32 = arith.constant 0 : i32
    %c0_i32_0 = arith.constant 0 : i32
    %c0_i32_1 = arith.constant 0 : i32
    return %c0_i32, %c0_i32_0 : i32, i32
  }
  func.func @transform_7(%arg0: i32) -> (i32, i32) {
    %c0_i32 = arith.constant 0 : i32
    %c0_i32_0 = arith.constant 0 : i32
    %c0_i32_1 = arith.constant 0 : i32
    return %c0_i32, %c0_i32_0 : i32, i32
  }
  func.func @transform_8(%arg0: i32) -> (i32, i32) {
    %c0_i32 = arith.constant 0 : i32
    %c0_i32_0 = arith.constant 0 : i32
    %c0_i32_1 = arith.constant 0 : i32
    return %c0_i32, %c0_i32_0 : i32, i32
  }
  func.func @transform_9(%arg0: i32) -> (i32, i32) {
    %c0_i32 = arith.constant 0 : i32
    %c0_i32_0 = arith.constant 0 : i32
    return %arg0, %c0_i32 : i32, i32
  }
}

module attributes {stable_mosaic.version = 11 : i64} {
  func.func @_fc_kernel(%arg0: i32, %arg1: memref<8x24xf32, #tpu.memory_space<vmem>>, %arg2: memref<24x128xf32, #tpu.memory_space<vmem>>, %arg3: memref<1x128xf32, #tpu.memory_space<vmem>>, %arg4: memref<128x128xf32, #tpu.memory_space<vmem>>, %arg5: memref<1x128xf32, #tpu.memory_space<vmem>>, %arg6: memref<128x128xf32, #tpu.memory_space<vmem>>, %arg7: memref<1x128xf32, #tpu.memory_space<vmem>>, %arg8: memref<128x16xf32, #tpu.memory_space<vmem>>, %arg9: memref<1x16xf32, #tpu.memory_space<vmem>>, %arg10: memref<8x16xf32, #tpu.memory_space<vmem>>) attributes {dimension_semantics = [#tpu.dimension_semantics<parallel>], iteration_bounds = array<i64: 1>, scalar_prefetch = 0 : i64, scratch_operands = 0 : i64, tpu.core_type = #tpu.core_type<tc>, window_params = [{transform_indices = @transform_0, window_bounds = array<i64: 8, 24>}, {pipeline_mode = #tpu.pipeline_mode<synchronous>, transform_indices = @transform_1, window_bounds = array<i64: 24, 128>}, {pipeline_mode = #tpu.pipeline_mode<synchronous>, transform_indices = @transform_2, window_bounds = array<i64: 1, 128>}, {pipeline_mode = #tpu.pipeline_mode<synchronous>, transform_indices = @transform_3, window_bounds = array<i64: 128, 128>}, {pipeline_mode = #tpu.pipeline_mode<synchronous>, transform_indices = @transform_4, window_bounds = array<i64: 1, 128>}, {pipeline_mode = #tpu.pipeline_mode<synchronous>, transform_indices = @transform_5, window_bounds = array<i64: 128, 128>}, {pipeline_mode = #tpu.pipeline_mode<synchronous>, transform_indices = @transform_6, window_bounds = array<i64: 1, 128>}, {pipeline_mode = #tpu.pipeline_mode<synchronous>, transform_indices = @transform_7, window_bounds = array<i64: 128, 16>}, {pipeline_mode = #tpu.pipeline_mode<synchronous>, transform_indices = @transform_8, window_bounds = array<i64: 1, 16>}, {transform_indices = @transform_9, window_bounds = array<i64: 8, 16>}]} {
    %c0 = arith.constant 0 : index
    %c0_0 = arith.constant 0 : index
    %0 = vector.load %arg1[%c0, %c0_0] : memref<8x24xf32, #tpu.memory_space<vmem>>, vector<8x24xf32>
    %c0_1 = arith.constant 0 : index
    %c0_2 = arith.constant 0 : index
    %1 = vector.load %arg2[%c0_1, %c0_2] : memref<24x128xf32, #tpu.memory_space<vmem>>, vector<24x128xf32>
    %cst = arith.constant dense<0.000000e+00> : vector<8x128xf32>
    %2 = tpu.matmul %0, %1, %cst {dimension_numbers = #tpu.dot_dimension_numbers<[1], [0], [0], [1], [0, 0, 1, 1], [], []>} : vector<8x24xf32>, vector<24x128xf32>, vector<8x128xf32> -> vector<8x128xf32>
    %c0_3 = arith.constant 0 : index
    %c0_4 = arith.constant 0 : index
    %3 = vector.load %arg3[%c0_3, %c0_4] : memref<1x128xf32, #tpu.memory_space<vmem>>, vector<1x128xf32>
    %4 = vector.broadcast %3 : vector<1x128xf32> to vector<8x128xf32>
    %5 = arith.addf %2, %4 : vector<8x128xf32>
    %cst_5 = arith.constant 0.000000e+00 : f32
    %6 = vector.broadcast %cst_5 : f32 to vector<8x128xf32>
    %7 = arith.maximumf %5, %6 : vector<8x128xf32>
    %c0_6 = arith.constant 0 : index
    %c0_7 = arith.constant 0 : index
    %8 = vector.load %arg4[%c0_6, %c0_7] : memref<128x128xf32, #tpu.memory_space<vmem>>, vector<128x128xf32>
    %cst_8 = arith.constant dense<0.000000e+00> : vector<8x128xf32>
    %9 = tpu.matmul %7, %8, %cst_8 {dimension_numbers = #tpu.dot_dimension_numbers<[1], [0], [0], [1], [0, 0, 1, 1], [], []>} : vector<8x128xf32>, vector<128x128xf32>, vector<8x128xf32> -> vector<8x128xf32>
    %c0_9 = arith.constant 0 : index
    %c0_10 = arith.constant 0 : index
    %10 = vector.load %arg5[%c0_9, %c0_10] : memref<1x128xf32, #tpu.memory_space<vmem>>, vector<1x128xf32>
    %11 = vector.broadcast %10 : vector<1x128xf32> to vector<8x128xf32>
    %12 = arith.addf %9, %11 : vector<8x128xf32>
    %cst_11 = arith.constant 0.000000e+00 : f32
    %13 = vector.broadcast %cst_11 : f32 to vector<8x128xf32>
    %14 = arith.maximumf %12, %13 : vector<8x128xf32>
    %c0_12 = arith.constant 0 : index
    %c0_13 = arith.constant 0 : index
    %15 = vector.load %arg6[%c0_12, %c0_13] : memref<128x128xf32, #tpu.memory_space<vmem>>, vector<128x128xf32>
    %cst_14 = arith.constant dense<0.000000e+00> : vector<8x128xf32>
    %16 = tpu.matmul %14, %15, %cst_14 {dimension_numbers = #tpu.dot_dimension_numbers<[1], [0], [0], [1], [0, 0, 1, 1], [], []>} : vector<8x128xf32>, vector<128x128xf32>, vector<8x128xf32> -> vector<8x128xf32>
    %c0_15 = arith.constant 0 : index
    %c0_16 = arith.constant 0 : index
    %17 = vector.load %arg7[%c0_15, %c0_16] : memref<1x128xf32, #tpu.memory_space<vmem>>, vector<1x128xf32>
    %18 = vector.broadcast %17 : vector<1x128xf32> to vector<8x128xf32>
    %19 = arith.addf %16, %18 : vector<8x128xf32>
    %cst_17 = arith.constant 0.000000e+00 : f32
    %20 = vector.broadcast %cst_17 : f32 to vector<8x128xf32>
    %21 = arith.maximumf %19, %20 : vector<8x128xf32>
    %c0_18 = arith.constant 0 : index
    %c0_19 = arith.constant 0 : index
    %22 = vector.load %arg8[%c0_18, %c0_19] : memref<128x16xf32, #tpu.memory_space<vmem>>, vector<128x16xf32>
    %cst_20 = arith.constant dense<0.000000e+00> : vector<8x16xf32>
    %23 = tpu.matmul %21, %22, %cst_20 {dimension_numbers = #tpu.dot_dimension_numbers<[1], [0], [0], [1], [0, 0, 1, 1], [], []>} : vector<8x128xf32>, vector<128x16xf32>, vector<8x16xf32> -> vector<8x16xf32>
    %c0_21 = arith.constant 0 : index
    %c0_22 = arith.constant 0 : index
    %24 = vector.load %arg9[%c0_21, %c0_22] : memref<1x16xf32, #tpu.memory_space<vmem>>, vector<1x16xf32>
    %25 = vector.broadcast %24 : vector<1x16xf32> to vector<8x16xf32>
    %26 = arith.addf %23, %25 : vector<8x16xf32>
    %c0_23 = arith.constant 0 : index
    %c0_24 = arith.constant 0 : index
    %27 = vector.load %arg10[%c0_23, %c0_24] : memref<8x16xf32, #tpu.memory_space<vmem>>, vector<8x16xf32>
    tpu.vector_store %arg10[%c0_23, %c0_24], %26 {strides = array<i32>} : memref<8x16xf32, #tpu.memory_space<vmem>>, vector<8x16xf32>,
    return
  }
  func.func @transform_0(%arg0: i32) -> (i32, i32) {
    %c0_i32 = arith.constant 0 : i32
    %c0_i32_0 = arith.constant 0 : i32
    return %arg0, %c0_i32 : i32, i32
  }
  func.func @transform_1(%arg0: i32) -> (i32, i32) {
    %c0_i32 = arith.constant 0 : i32
    %c0_i32_0 = arith.constant 0 : i32
    %c0_i32_1 = arith.constant 0 : i32
    return %c0_i32, %c0_i32_0 : i32, i32
  }
  func.func @transform_2(%arg0: i32) -> (i32, i32) {
    %c0_i32 = arith.constant 0 : i32
    %c0_i32_0 = arith.constant 0 : i32
    %c0_i32_1 = arith.constant 0 : i32
    return %c0_i32, %c0_i32_0 : i32, i32
  }
  func.func @transform_3(%arg0: i32) -> (i32, i32) {
    %c0_i32 = arith.constant 0 : i32
    %c0_i32_0 = arith.constant 0 : i32
    %c0_i32_1 = arith.constant 0 : i32
    return %c0_i32, %c0_i32_0 : i32, i32
  }
  func.func @transform_4(%arg0: i32) -> (i32, i32) {
    %c0_i32 = arith.constant 0 : i32
    %c0_i32_0 = arith.constant 0 : i32
    %c0_i32_1 = arith.constant 0 : i32
    return %c0_i32, %c0_i32_0 : i32, i32
  }
  func.func @transform_5(%arg0: i32) -> (i32, i32) {
    %c0_i32 = arith.constant 0 : i32
    %c0_i32_0 = arith.constant 0 : i32
    %c0_i32_1 = arith.constant 0 : i32
    return %c0_i32, %c0_i32_0 : i32, i32
  }
  func.func @transform_6(%arg0: i32) -> (i32, i32) {
    %c0_i32 = arith.constant 0 : i32
    %c0_i32_0 = arith.constant 0 : i32
    %c0_i32_1 = arith.constant 0 : i32
    return %c0_i32, %c0_i32_0 : i32, i32
  }
  func.func @transform_7(%arg0: i32) -> (i32, i32) {
    %c0_i32 = arith.constant 0 : i32
    %c0_i32_0 = arith.constant 0 : i32
    %c0_i32_1 = arith.constant 0 : i32
    return %c0_i32, %c0_i32_0 : i32, i32
  }
  func.func @transform_8(%arg0: i32) -> (i32, i32) {
    %c0_i32 = arith.constant 0 : i32
    %c0_i32_0 = arith.constant 0 : i32
    %c0_i32_1 = arith.constant 0 : i32
    return %c0_i32, %c0_i32_0 : i32, i32
  }
  func.func @transform_9(%arg0: i32) -> (i32, i32) {
    %c0_i32 = arith.constant 0 : i32
    %c0_i32_0 = arith.constant 0 : i32
    return %arg0, %c0_i32 : i32, i32
  }
}

</mosaic_0001>

<llo_original>
// kernel: fc_model_forward.1
$region0: #{fc_model_forward.1}
  #allocation0 [shape = 'u32[]', space=smem, size = 0x4, offset = 0x4, fixed_abs, tag = 'smem constant byte address 0x4 - core index']
  #allocation1 [shape = 'u32[144,128]{1,0:T(1,128)}', space=vmem, size = 0x12000, scoped, tag = 'internal scratch']
  %s0 = inlined_call_operand.hbm [shape: f32[8,24], index: 0, kind: input, shape index: {}]
  %s1 = inlined_call_operand.vmem [shape: f32[24,128], index: 1, kind: input, shape index: {}]
  %s2 = inlined_call_operand.vmem [shape: f32[1,128], index: 2, kind: input, shape index: {}]
  %s3 = inlined_call_operand.vmem [shape: f32[128,128], index: 3, kind: input, shape index: {}]
  %s4 = inlined_call_operand.vmem [shape: f32[1,128], index: 4, kind: input, shape index: {}]
  %s5 = inlined_call_operand.hbm [shape: f32[128,128], index: 5, kind: input, shape index: {}]
  %s6 = inlined_call_operand.vmem [shape: f32[1,128], index: 6, kind: input, shape index: {}]
  %s7 = inlined_call_operand.vmem [shape: f32[128,16], index: 7, kind: input, shape index: {}]
  %s8 = inlined_call_operand.vmem [shape: f32[1,16], index: 8, kind: input, shape index: {}]
  %s9 = inlined_call_operand.hbm [shape: f32[8,16], index: 9, kind: output, shape index: {}]
  %s10 = sld [smem:[#allocation0]]
  $region54: #{fc_model_forward.1} parent=0
    _
  %s12 = ssub.s32 1, %s10
  %s13 = scalar_select 0, %s12, %s10
  $region1: #{fc_model_forward.1} parent=0
    #allocation2 [shape = 'u8[4096]{0}', space=vmem, size = 0x1000, scoped, tag = 'input window, operand 0, single buffered']
    #allocation3 [shape = 's32[1]{0}', space=sflag, size = 0x4, scoped, tag = 'scoped memory for fc_model_forward.1']
    #allocation4 [shape = 's32[1]{0}', space=sflag, size = 0x4, scoped, tag = 'scoped memory for fc_model_forward.1']
    #allocation5 [shape = 'u8[65536]{0}', space=vmem, size = 0x10000, scoped, tag = 'input window, operand 5, single buffered']
    #allocation6 [shape = 's32[1]{0}', space=sflag, size = 0x4, scoped, tag = 'scoped memory for fc_model_forward.1']
    #allocation7 [shape = 'u8[4096]{0}', space=vmem, size = 0x1000, scoped, tag = 'output window, operand 0, single buffered']
    %14 = vsyncpa [#allocation3], 0
    %15 = vsyncpa [#allocation6], 0
    %16 = vsyncpa [#allocation4], 0
    // Predicated region
    $region2: #{fc_model_forward.1} parent=1 // pred_check
      _
    $region3: #{fc_model_forward.1} parent=1 // pred_check_branch
      %18 = sbr.rel (0) target = $region5
    $region4: #{fc_model_forward.1} parent=1 // pred_region
      %s20 = ssub.s32 128, 128
      %21 = vsyncadd [#allocation3], %s20
      %s23 = sshll.u32 [#allocation2], 4
      %s24 = int_to_ptr.vmem [resolvable:$true] %s23
      %26 = dma.hbm_to_vmem [thread:$0]  %s0, 128, %s24, [#allocation3]
    $region5: #{fc_model_forward.1} parent=1 // pred_fallthru
      _
    // Predicated region
    $region6: #{fc_model_forward.1} parent=1 // pred_check
      _
    $region7: #{fc_model_forward.1} parent=1 // pred_check_branch
      %28 = sbr.rel (0) target = $region9
    $region8: #{fc_model_forward.1} parent=1 // pred_region
      _
    $region9: #{fc_model_forward.1} parent=1 // pred_fallthru
      _
    // Predicated region
    $region10: #{fc_model_forward.1} parent=1 // pred_check
      _
    $region11: #{fc_model_forward.1} parent=1 // pred_check_branch
      %30 = sbr.rel (0) target = $region13
    $region12: #{fc_model_forward.1} parent=1 // pred_region
      _
    $region13: #{fc_model_forward.1} parent=1 // pred_fallthru
      _
    // Predicated region
    $region14: #{fc_model_forward.1} parent=1 // pred_check
      _
    $region15: #{fc_model_forward.1} parent=1 // pred_check_branch
      %32 = sbr.rel (0) target = $region17
    $region16: #{fc_model_forward.1} parent=1 // pred_region
      _
    $region17: #{fc_model_forward.1} parent=1 // pred_fallthru
      _
    // Predicated region
    $region18: #{fc_model_forward.1} parent=1 // pred_check
      _
    $region19: #{fc_model_forward.1} parent=1 // pred_check_branch
      %34 = sbr.rel (0) target = $region21
    $region20: #{fc_model_forward.1} parent=1 // pred_region
      _
    $region21: #{fc_model_forward.1} parent=1 // pred_fallthru
      _
    // Predicated region
    $region22: #{fc_model_forward.1} parent=1 // pred_check
      _
    $region23: #{fc_model_forward.1} parent=1 // pred_check_branch
      %36 = sbr.rel (0) target = $region25
    $region24: #{fc_model_forward.1} parent=1 // pred_region
      %s38 = ssub.s32 2048, 2048
      %39 = vsyncadd [#allocation6], %s38
      %s40 = sshll.u32 [#allocation5], 4
      %s41 = int_to_ptr.vmem [resolvable:$true] %s40
      %46 = dma.hbm_to_vmem [thread:$0]  %s5, 2048, %s41, [#allocation6], 128, 128, 8
    $region25: #{fc_model_forward.1} parent=1 // pred_fallthru
      _
    // Predicated region
    $region26: #{fc_model_forward.1} parent=1 // pred_check
      _
    $region27: #{fc_model_forward.1} parent=1 // pred_check_branch
      %48 = sbr.rel (0) target = $region29
    $region28: #{fc_model_forward.1} parent=1 // pred_region
      _
    $region29: #{fc_model_forward.1} parent=1 // pred_fallthru
      _
    // Predicated region
    $region30: #{fc_model_forward.1} parent=1 // pred_check
      _
    $region31: #{fc_model_forward.1} parent=1 // pred_check_branch
      %50 = sbr.rel (0) target = $region33
    $region32: #{fc_model_forward.1} parent=1 // pred_region
      _
    $region33: #{fc_model_forward.1} parent=1 // pred_fallthru
      _
    // Predicated region
    $region34: #{fc_model_forward.1} parent=1 // pred_check
      _
    $region35: #{fc_model_forward.1} parent=1 // pred_check_branch
      %52 = sbr.rel (0) target = $region37
    $region36: #{fc_model_forward.1} parent=1 // pred_region
      _
    $region37: #{fc_model_forward.1} parent=1 // pred_fallthru
      _
    // Predicated region
    $region38: #{fc_model_forward.1} parent=1 // pred_check
      _
    $region39: #{fc_model_forward.1} parent=1 // pred_check_branch
      %54 = sbr.rel (0) target = $region41
    $region40: #{fc_model_forward.1} parent=1 // pred_region
      %55 = dma.done [#allocation3], 128
    $region41: #{fc_model_forward.1} parent=1 // pred_fallthru
      _
    // Predicated region
    $region42: #{fc_model_forward.1} parent=1 // pred_check
      _
    $region43: #{fc_model_forward.1} parent=1 // pred_check_branch
      %57 = sbr.rel (0) target = $region45
    $region44: #{fc_model_forward.1} parent=1 // pred_region
      %58 = dma.done [#allocation6], 2048
    $region45: #{fc_model_forward.1} parent=1 // pred_fallthru
      _
    %v59 = vld [vmem:[#allocation2] sm:$0xff]
    %v60 = vld [vmem:[%s1] sm:$0xff]
    %v61 = vld [vmem:[%s1 + $0x8] sm:$0xff]
    %v62 = vld [vmem:[%s1 + $0x10] sm:$0xff]
    %v63 = vld [vmem:[%s2] sm:$0x1]
    %v65 = vlaneseq
    %v66 = vshrl.u32 %v65, 7
    %v67 = vsub.s32 0, %v66
    %v68 = vrot.slane %v63, %v67
    %vm70 = vcmask 195584
    %v72 = vsel %vm70, %v59, 0
    %74 = vmatprep.subr.mxu0 0.0
    %75 = vmatpush1.msra.mxu0 %v60
    %76 = vmatprep.subr.mxu0 0.0
    %77 = vmatpush1.msra.mxu0 %v61
    %78 = vmatprep.subr.mxu0 0.0
    %79 = vmatpush1.msra.mxu0 %v62
    %80 = vmatprep.subr.mxu0 0.0
    %81 = vmatpush1.msra.mxu0 0.0
    %82 = vmatprep.subr.mxu0 0.0
    %83 = vmatpush1.msra.mxu0 0.0
    %84 = vmatprep.subr.mxu0 0.0
    %85 = vmatpush1.msra.mxu0 0.0
    %86 = vmatprep.subr.mxu0 0.0
    %87 = vmatpush1.msra.mxu0 0.0
    %88 = vmatprep.subr.mxu0 0.0
    %89 = vmatpush1.msra.mxu0 0.0
    %90 = vmatprep.subr.mxu0 0.0
    %91 = vmatpush1.msra.mxu0 0.0
    %92 = vmatprep.subr.mxu0 0.0
    %93 = vmatpush1.msra.mxu0 0.0
    %94 = vmatprep.subr.mxu0 0.0
    %95 = vmatpush1.msra.mxu0 0.0
    %96 = vmatprep.subr.mxu0 0.0
    %97 = vmatpush1.msra.mxu0 0.0
    %98 = vmatprep.subr.mxu0 0.0
    %99 = vmatpush1.msra.mxu0 0.0
    %100 = vmatprep.subr.mxu0 0.0
    %101 = vmatpush1.msra.mxu0 0.0
    %102 = vmatprep.subr.mxu0 0.0
    %103 = vmatpush1.msra.mxu0 0.0
    %104 = vmatprep.subr.mxu0 0.0
    %105 = vmatpush1.msra.mxu0 0.0
    %106 = vmatprep.subr.mxu0 0.0
    %107 = vmatpush1.msra.mxu0 0.0
    %108 = vmatprep.subr.mxu0 0.0
    %109 = vmatpush1.msra.mxu0 0.0
    %110 = vmatprep.subr.mxu0 0.0
    %111 = vmatpush1.msra.mxu0 0.0
    %112 = vmatprep.subr.mxu0 0.0
    %113 = vmatpush1.msra.mxu0 0.0
    %114 = vmatprep.subr.mxu0 0.0
    %115 = vmatpush1.msra.mxu0 0.0
    %116 = vmatprep.subr.mxu0 0.0
    %117 = vmatpush1.msra.mxu0 0.0
    %118 = vmatprep.subr.mxu0 0.0
    %119 = vmatpush1.msra.mxu0 0.0
    %120 = vmatprep.subr.mxu0 0.0
    %121 = vmatpush1.msra.mxu0 0.0
    %122 = vmatprep.subr.mxu0 0.0
    %123 = vmatpush1.msra.mxu0 0.0
    %124 = vmatprep.subr.mxu0 0.0
    %125 = vmatpush1.msra.mxu0 0.0
    %126 = vmatprep.subr.mxu0 0.0
    %127 = vmatpush1.msra.mxu0 0.0
    %128 = vmatprep.subr.mxu0 0.0
    %129 = vmatpush1.msra.mxu0 0.0
    %130 = vmatprep.subr.mxu0 0.0
    %131 = vmatpush1.msra.mxu0 0.0
    %132 = vmatprep.subr.mxu0 0.0
    %133 = vmatpush1.msra.mxu0 0.0
    %134 = vmatprep.subr.mxu0 0.0
    %135 = vmatpush1.msra.mxu0 0.0
    %136 = vmatprep.subr.mxu0 0.0
    %137 = vmatpush1.msra.mxu0 0.0
    %138 = vmatprep.mubr.f32.mxu0 0.0
    %139 = vmatmul.mubr.f32.gmra.mrb[0].mxu0 %v72
    %v140 = vpop.f32.mrb[0].mxu0
    %v141 = vadd.f32 %v68, %v140
    %v142 = vpop.f32.mrb[0].mxu0
    %143 = vdwg.mxu0
    %v144 = vmax.f32 %v141, 0.0
    %v145 = vld [vmem:[%s3] sm:$0xff]
    %v146 = vld [vmem:[%s3 + $0x8] sm:$0xff]
    %v147 = vld [vmem:[%s3 + $0x10] sm:$0xff]
    %v148 = vld [vmem:[%s3 + $0x18] sm:$0xff]
    %v149 = vld [vmem:[%s3 + $0x20] sm:$0xff]
    %v150 = vld [vmem:[%s3 + $0x28] sm:$0xff]
    %v151 = vld [vmem:[%s3 + $0x30] sm:$0xff]
    %v152 = vld [vmem:[%s3 + $0x38] sm:$0xff]
    %v153 = vld [vmem:[%s3 + $0x40] sm:$0xff]
    %v154 = vld [vmem:[%s3 + $0x48] sm:$0xff]
    %v155 = vld [vmem:[%s3 + $0x50] sm:$0xff]
    %v156 = vld [vmem:[%s3 + $0x58] sm:$0xff]
    %v157 = vld [vmem:[%s3 + $0x60] sm:$0xff]
    %v158 = vld [vmem:[%s3 + $0x68] sm:$0xff]
    %v159 = vld [vmem:[%s3 + $0x70] sm:$0xff]
    %v160 = vld [vmem:[%s3 + $0x78] sm:$0xff]
    %v161 = vld [vmem:[%s4] sm:$0x1]
    %v163 = vlaneseq
    %v164 = vshrl.u32 %v163, 7
    %v165 = vsub.s32 0, %v164
    %v166 = vrot.slane %v161, %v165
    %168 = vmatprep.subr.mxu0 0.0
    %169 = vmatpush1.msra.mxu0 %v145
    %170 = vmatprep.subr.mxu0 0.0
    %171 = vmatpush1.msra.mxu0 %v146
    %172 = vmatprep.subr.mxu0 0.0
    %173 = vmatpush1.msra.mxu0 %v147
    %174 = vmatprep.subr.mxu0 0.0
    %175 = vmatpush1.msra.mxu0 %v148
    %176 = vmatprep.subr.mxu0 0.0
    %177 = vmatpush1.msra.mxu0 %v149
    %178 = vmatprep.subr.mxu0 0.0
    %179 = vmatpush1.msra.mxu0 %v150
    %180 = vmatprep.subr.mxu0 0.0
    %181 = vmatpush1.msra.mxu0 %v151
    %182 = vmatprep.subr.mxu0 0.0
    %183 = vmatpush1.msra.mxu0 %v152
    %184 = vmatprep.subr.mxu0 0.0
    %185 = vmatpush1.msra.mxu0 %v153
    %186 = vmatprep.subr.mxu0 0.0
    %187 = vmatpush1.msra.mxu0 %v154
    %188 = vmatprep.subr.mxu0 0.0
    %189 = vmatpush1.msra.mxu0 %v155
    %190 = vmatprep.subr.mxu0 0.0
    %191 = vmatpush1.msra.mxu0 %v156
    %192 = vmatprep.subr.mxu0 0.0
    %193 = vmatpush1.msra.mxu0 %v157
    %194 = vmatprep.subr.mxu0 0.0
    %195 = vmatpush1.msra.mxu0 %v158
    %196 = vmatprep.subr.mxu0 0.0
    %197 = vmatpush1.msra.mxu0 %v159
    %198 = vmatprep.subr.mxu0 0.0
    %199 = vmatpush1.msra.mxu0 %v160
    %200 = vmatprep.subr.mxu0 0.0
    %201 = vmatpush1.msra.mxu0 0.0
    %202 = vmatprep.subr.mxu0 0.0
    %203 = vmatpush1.msra.mxu0 0.0
    %204 = vmatprep.subr.mxu0 0.0
    %205 = vmatpush1.msra.mxu0 0.0
    %206 = vmatprep.subr.mxu0 0.0
    %207 = vmatpush1.msra.mxu0 0.0
    %208 = vmatprep.subr.mxu0 0.0
    %209 = vmatpush1.msra.mxu0 0.0
    %210 = vmatprep.subr.mxu0 0.0
    %211 = vmatpush1.msra.mxu0 0.0
    %212 = vmatprep.subr.mxu0 0.0
    %213 = vmatpush1.msra.mxu0 0.0
    %214 = vmatprep.subr.mxu0 0.0
    %215 = vmatpush1.msra.mxu0 0.0
    %216 = vmatprep.subr.mxu0 0.0
    %217 = vmatpush1.msra.mxu0 0.0
    %218 = vmatprep.subr.mxu0 0.0
    %219 = vmatpush1.msra.mxu0 0.0
    %220 = vmatprep.subr.mxu0 0.0
    %221 = vmatpush1.msra.mxu0 0.0
    %222 = vmatprep.subr.mxu0 0.0
    %223 = vmatpush1.msra.mxu0 0.0
    %224 = vmatprep.subr.mxu0 0.0
    %225 = vmatpush1.msra.mxu0 0.0
    %226 = vmatprep.subr.mxu0 0.0
    %227 = vmatpush1.msra.mxu0 0.0
    %228 = vmatprep.subr.mxu0 0.0
    %229 = vmatpush1.msra.mxu0 0.0
    %230 = vmatprep.subr.mxu0 0.0
    %231 = vmatpush1.msra.mxu0 0.0
    %232 = vmatprep.mubr.f32.mxu0 0.0
    %233 = vmatmul.mubr.f32.gmra.mrb[0].mxu0 %v144
    %v234 = vpop.f32.mrb[0].mxu0
    %v235 = vadd.f32 %v166, %v234
    %v236 = vpop.f32.mrb[0].mxu0
    %237 = vdwg.mxu0
    %v238 = vmax.f32 %v235, 0.0
    %v239 = vld [vmem:[#allocation5] sm:$0xff]
    %v240 = vld [vmem:[#allocation5 + $0x8] sm:$0xff]
    %v241 = vld [vmem:[#allocation5 + $0x10] sm:$0xff]
    %v242 = vld [vmem:[#allocation5 + $0x18] sm:$0xff]
    %v243 = vld [vmem:[#allocation5 + $0x20] sm:$0xff]
    %v244 = vld [vmem:[#allocation5 + $0x28] sm:$0xff]
    %v245 = vld [vmem:[#allocation5 + $0x30] sm:$0xff]
    %v246 = vld [vmem:[#allocation5 + $0x38] sm:$0xff]
    %v247 = vld [vmem:[#allocation5 + $0x40] sm:$0xff]
    %v248 = vld [vmem:[#allocation5 + $0x48] sm:$0xff]
    %v249 = vld [vmem:[#allocation5 + $0x50] sm:$0xff]
    %v250 = vld [vmem:[#allocation5 + $0x58] sm:$0xff]
    %v251 = vld [vmem:[#allocation5 + $0x60] sm:$0xff]
    %v252 = vld [vmem:[#allocation5 + $0x68] sm:$0xff]
    %v253 = vld [vmem:[#allocation5 + $0x70] sm:$0xff]
    %v254 = vld [vmem:[#allocation5 + $0x78] sm:$0xff]
    %v255 = vld [vmem:[%s6] sm:$0x1]
    %v257 = vlaneseq
    %v258 = vshrl.u32 %v257, 7
    %v259 = vsub.s32 0, %v258
    %v260 = vrot.slane %v255, %v259
    %262 = vmatprep.subr.mxu0 0.0
    %263 = vmatpush1.msra.mxu0 %v239
    %264 = vmatprep.subr.mxu0 0.0
    %265 = vmatpush1.msra.mxu0 %v240
    %266 = vmatprep.subr.mxu0 0.0
    %267 = vmatpush1.msra.mxu0 %v241
    %268 = vmatprep.subr.mxu0 0.0
    %269 = vmatpush1.msra.mxu0 %v242
    %270 = vmatprep.subr.mxu0 0.0
    %271 = vmatpush1.msra.mxu0 %v243
    %272 = vmatprep.subr.mxu0 0.0
    %273 = vmatpush1.msra.mxu0 %v244
    %274 = vmatprep.subr.mxu0 0.0
    %275 = vmatpush1.msra.mxu0 %v245
    %276 = vmatprep.subr.mxu0 0.0
    %277 = vmatpush1.msra.mxu0 %v246
    %278 = vmatprep.subr.mxu0 0.0
    %279 = vmatpush1.msra.mxu0 %v247
    %280 = vmatprep.subr.mxu0 0.0
    %281 = vmatpush1.msra.mxu0 %v248
    %282 = vmatprep.subr.mxu0 0.0
    %283 = vmatpush1.msra.mxu0 %v249
    %284 = vmatprep.subr.mxu0 0.0
    %285 = vmatpush1.msra.mxu0 %v250
    %286 = vmatprep.subr.mxu0 0.0
    %287 = vmatpush1.msra.mxu0 %v251
    %288 = vmatprep.subr.mxu0 0.0
    %289 = vmatpush1.msra.mxu0 %v252
    %290 = vmatprep.subr.mxu0 0.0
    %291 = vmatpush1.msra.mxu0 %v253
    %292 = vmatprep.subr.mxu0 0.0
    %293 = vmatpush1.msra.mxu0 %v254
    %294 = vmatprep.subr.mxu0 0.0
    %295 = vmatpush1.msra.mxu0 0.0
    %296 = vmatprep.subr.mxu0 0.0
    %297 = vmatpush1.msra.mxu0 0.0
    %298 = vmatprep.subr.mxu0 0.0
    %299 = vmatpush1.msra.mxu0 0.0
    %300 = vmatprep.subr.mxu0 0.0
    %301 = vmatpush1.msra.mxu0 0.0
    %302 = vmatprep.subr.mxu0 0.0
    %303 = vmatpush1.msra.mxu0 0.0
    %304 = vmatprep.subr.mxu0 0.0
    %305 = vmatpush1.msra.mxu0 0.0
    %306 = vmatprep.subr.mxu0 0.0
    %307 = vmatpush1.msra.mxu0 0.0
    %308 = vmatprep.subr.mxu0 0.0
    %309 = vmatpush1.msra.mxu0 0.0
    %310 = vmatprep.subr.mxu0 0.0
    %311 = vmatpush1.msra.mxu0 0.0
    %312 = vmatprep.subr.mxu0 0.0
    %313 = vmatpush1.msra.mxu0 0.0
    %314 = vmatprep.subr.mxu0 0.0
    %315 = vmatpush1.msra.mxu0 0.0
    %316 = vmatprep.subr.mxu0 0.0
    %317 = vmatpush1.msra.mxu0 0.0
    %318 = vmatprep.subr.mxu0 0.0
    %319 = vmatpush1.msra.mxu0 0.0
    %320 = vmatprep.subr.mxu0 0.0
    %321 = vmatpush1.msra.mxu0 0.0
    %322 = vmatprep.subr.mxu0 0.0
    %323 = vmatpush1.msra.mxu0 0.0
    %324 = vmatprep.subr.mxu0 0.0
    %325 = vmatpush1.msra.mxu0 0.0
    %326 = vmatprep.mubr.f32.mxu0 0.0
    %327 = vmatmul.mubr.f32.gmra.mrb[0].mxu0 %v238
    %v328 = vpop.f32.mrb[0].mxu0
    %v329 = vadd.f32 %v260, %v328
    %v330 = vpop.f32.mrb[0].mxu0
    %331 = vdwg.mxu0
    %v332 = vmax.f32 %v329, 0.0
    %v333 = vld [vmem:[%s7] sm:$0xff]
    %v334 = vld [vmem:[%s7 + $0x8] sm:$0xff]
    %v335 = vld [vmem:[%s7 + $0x10] sm:$0xff]
    %v336 = vld [vmem:[%s7 + $0x18] sm:$0xff]
    %v337 = vld [vmem:[%s7 + $0x20] sm:$0xff]
    %v338 = vld [vmem:[%s7 + $0x28] sm:$0xff]
    %v339 = vld [vmem:[%s7 + $0x30] sm:$0xff]
    %v340 = vld [vmem:[%s7 + $0x38] sm:$0xff]
    %v341 = vld [vmem:[%s7 + $0x40] sm:$0xff]
    %v342 = vld [vmem:[%s7 + $0x48] sm:$0xff]
    %v343 = vld [vmem:[%s7 + $0x50] sm:$0xff]
    %v344 = vld [vmem:[%s7 + $0x58] sm:$0xff]
    %v345 = vld [vmem:[%s7 + $0x60] sm:$0xff]
    %v346 = vld [vmem:[%s7 + $0x68] sm:$0xff]
    %v347 = vld [vmem:[%s7 + $0x70] sm:$0xff]
    %v348 = vld [vmem:[%s7 + $0x78] sm:$0xff]
    %v349 = vld [vmem:[%s8] sm:$0x1]
    %v351 = vlaneseq
    %v352 = vshrl.u32 %v351, 7
    %v353 = vsub.s32 0, %v352
    %v354 = vrot.slane %v349, %v353
    %356 = vmatprep.subr.mxu0 0.0
    %357 = vmatpush1.msra.mxu0 %v333
    %358 = vmatprep.subr.mxu0 0.0
    %359 = vmatpush1.msra.mxu0 %v334
    %360 = vmatprep.subr.mxu0 0.0
    %361 = vmatpush1.msra.mxu0 %v335
    %362 = vmatprep.subr.mxu0 0.0
    %363 = vmatpush1.msra.mxu0 %v336
    %364 = vmatprep.subr.mxu0 0.0
    %365 = vmatpush1.msra.mxu0 %v337
    %366 = vmatprep.subr.mxu0 0.0
    %367 = vmatpush1.msra.mxu0 %v338
    %368 = vmatprep.subr.mxu0 0.0
    %369 = vmatpush1.msra.mxu0 %v339
    %370 = vmatprep.subr.mxu0 0.0
    %371 = vmatpush1.msra.mxu0 %v340
    %372 = vmatprep.subr.mxu0 0.0
    %373 = vmatpush1.msra.mxu0 %v341
    %374 = vmatprep.subr.mxu0 0.0
    %375 = vmatpush1.msra.mxu0 %v342
    %376 = vmatprep.subr.mxu0 0.0
    %377 = vmatpush1.msra.mxu0 %v343
    %378 = vmatprep.subr.mxu0 0.0
    %379 = vmatpush1.msra.mxu0 %v344
    %380 = vmatprep.subr.mxu0 0.0
    %381 = vmatpush1.msra.mxu0 %v345
    %382 = vmatprep.subr.mxu0 0.0
    %383 = vmatpush1.msra.mxu0 %v346
    %384 = vmatprep.subr.mxu0 0.0
    %385 = vmatpush1.msra.mxu0 %v347
    %386 = vmatprep.subr.mxu0 0.0
    %387 = vmatpush1.msra.mxu0 %v348
    %388 = vmatprep.subr.mxu0 0.0
    %389 = vmatpush1.msra.mxu0 0.0
    %390 = vmatprep.subr.mxu0 0.0
    %391 = vmatpush1.msra.mxu0 0.0
    %392 = vmatprep.subr.mxu0 0.0
    %393 = vmatpush1.msra.mxu0 0.0
    %394 = vmatprep.subr.mxu0 0.0
    %395 = vmatpush1.msra.mxu0 0.0
    %396 = vmatprep.subr.mxu0 0.0
    %397 = vmatpush1.msra.mxu0 0.0
    %398 = vmatprep.subr.mxu0 0.0
    %399 = vmatpush1.msra.mxu0 0.0
    %400 = vmatprep.subr.mxu0 0.0
    %401 = vmatpush1.msra.mxu0 0.0
    %402 = vmatprep.subr.mxu0 0.0
    %403 = vmatpush1.msra.mxu0 0.0
    %404 = vmatprep.subr.mxu0 0.0
    %405 = vmatpush1.msra.mxu0 0.0
    %406 = vmatprep.subr.mxu0 0.0
    %407 = vmatpush1.msra.mxu0 0.0
    %408 = vmatprep.subr.mxu0 0.0
    %409 = vmatpush1.msra.mxu0 0.0
    %410 = vmatprep.subr.mxu0 0.0
    %411 = vmatpush1.msra.mxu0 0.0
    %412 = vmatprep.subr.mxu0 0.0
    %413 = vmatpush1.msra.mxu0 0.0
    %414 = vmatprep.subr.mxu0 0.0
    %415 = vmatpush1.msra.mxu0 0.0
    %416 = vmatprep.subr.mxu0 0.0
    %417 = vmatpush1.msra.mxu0 0.0
    %418 = vmatprep.subr.mxu0 0.0
    %419 = vmatpush1.msra.mxu0 0.0
    %420 = vmatprep.mubr.f32.mxu0 0.0
    %421 = vmatmul.mubr.f32.gmra.mrb[0].mxu0 %v332
    %v422 = vpop.f32.mrb[0].mxu0
    %v423 = vadd.f32 %v354, %v422
    %v424 = vpop.f32.mrb[0].mxu0
    %425 = vdwg.mxu0
    %vm426 = vcmask 130048
    %427 = vst.msk [vmem:[#allocation7] sm:$0xff] %vm426, %v423
    // Predicated region
    $region46: #{fc_model_forward.1} parent=1 // pred_check
      _
    $region47: #{fc_model_forward.1} parent=1 // pred_check_branch
      %429 = sbr.rel (0) target = $region49
    $region48: #{fc_model_forward.1} parent=1 // pred_region
      %s431 = ssub.s32 128, 128
      %432 = vsyncadd [#allocation4], %s431
      %s434 = sshll.u32 [#allocation7], 4
      %s435 = int_to_ptr.vmem [resolvable:$true] %s434
      %437 = dma.vmem_to_hbm [thread:$0]  %s435, 128, %s9, [#allocation4]
    $region49: #{fc_model_forward.1} parent=1 // pred_fallthru
      _
    // Predicated region
    $region50: #{fc_model_forward.1} parent=1 // pred_check
      _
    $region51: #{fc_model_forward.1} parent=1 // pred_check_branch
      %439 = sbr.rel (0) target = $region53
    $region52: #{fc_model_forward.1} parent=1 // pred_region
      %440 = dma.done [#allocation4], 128
    $region53: #{fc_model_forward.1} parent=1 // pred_fallthru
      _
    %441 = vsyncpa [#allocation3], 1
    %442 = vsyncpa [#allocation6], 1
    %443 = vsyncpa [#allocation4], 1

// kernel: fc_model_forward.1
$region0: #{fc_model_forward.1}
  #allocation0 [shape = 'u32[]', space=smem, size = 0x4, offset = 0x4, fixed_abs, tag = 'smem constant byte address 0x4 - core index']
  #allocation1 [shape = 'u32[144,128]{1,0:T(1,128)}', space=vmem, size = 0x12000, scoped, tag = 'internal scratch']
  %s0 = inlined_call_operand.hbm [shape: f32[8,24], index: 0, kind: input, shape index: {}]
  %s1 = inlined_call_operand.vmem [shape: f32[24,128], index: 1, kind: input, shape index: {}]
  %s2 = inlined_call_operand.vmem [shape: f32[1,128], index: 2, kind: input, shape index: {}]
  %s3 = inlined_call_operand.vmem [shape: f32[128,128], index: 3, kind: input, shape index: {}]
  %s4 = inlined_call_operand.vmem [shape: f32[1,128], index: 4, kind: input, shape index: {}]
  %s5 = inlined_call_operand.hbm [shape: f32[128,128], index: 5, kind: input, shape index: {}]
  %s6 = inlined_call_operand.vmem [shape: f32[1,128], index: 6, kind: input, shape index: {}]
  %s7 = inlined_call_operand.vmem [shape: f32[128,16], index: 7, kind: input, shape index: {}]
  %s8 = inlined_call_operand.vmem [shape: f32[1,16], index: 8, kind: input, shape index: {}]
  %s9 = inlined_call_operand.hbm [shape: f32[8,16], index: 9, kind: output, shape index: {}]
  %s10 = sld [smem:[#allocation0]]
  $region54: #{fc_model_forward.1} parent=0
    _
  %s12 = ssub.s32 1, %s10
  %s13 = scalar_select 0, %s12, %s10
  $region1: #{fc_model_forward.1} parent=0
    #allocation2 [shape = 'u8[4096]{0}', space=vmem, size = 0x1000, scoped, tag = 'input window, operand 0, single buffered']
    #allocation3 [shape = 's32[1]{0}', space=sflag, size = 0x4, scoped, tag = 'scoped memory for fc_model_forward.1']
    #allocation4 [shape = 's32[1]{0}', space=sflag, size = 0x4, scoped, tag = 'scoped memory for fc_model_forward.1']
    #allocation5 [shape = 'u8[65536]{0}', space=vmem, size = 0x10000, scoped, tag = 'input window, operand 5, single buffered']
    #allocation6 [shape = 's32[1]{0}', space=sflag, size = 0x4, scoped, tag = 'scoped memory for fc_model_forward.1']
    #allocation7 [shape = 'u8[4096]{0}', space=vmem, size = 0x1000, scoped, tag = 'output window, operand 0, single buffered']
    %14 = vsyncpa [#allocation3], 0
    %15 = vsyncpa [#allocation6], 0
    %16 = vsyncpa [#allocation4], 0
    // Predicated region
    $region2: #{fc_model_forward.1} parent=1 // pred_check
      _
    $region3: #{fc_model_forward.1} parent=1 // pred_check_branch
      %18 = sbr.rel (0) target = $region5
    $region4: #{fc_model_forward.1} parent=1 // pred_region
      %s20 = ssub.s32 128, 128
      %21 = vsyncadd [#allocation3], %s20
      %s23 = sshll.u32 [#allocation2], 4
      %s24 = int_to_ptr.vmem [resolvable:$true] %s23
      %26 = dma.hbm_to_vmem [thread:$0]  %s0, 128, %s24, [#allocation3]
    $region5: #{fc_model_forward.1} parent=1 // pred_fallthru
      _
    // Predicated region
    $region6: #{fc_model_forward.1} parent=1 // pred_check
      _
    $region7: #{fc_model_forward.1} parent=1 // pred_check_branch
      %28 = sbr.rel (0) target = $region9
    $region8: #{fc_model_forward.1} parent=1 // pred_region
      _
    $region9: #{fc_model_forward.1} parent=1 // pred_fallthru
      _
    // Predicated region
    $region10: #{fc_model_forward.1} parent=1 // pred_check
      _
    $region11: #{fc_model_forward.1} parent=1 // pred_check_branch
      %30 = sbr.rel (0) target = $region13
    $region12: #{fc_model_forward.1} parent=1 // pred_region
      _
    $region13: #{fc_model_forward.1} parent=1 // pred_fallthru
      _
    // Predicated region
    $region14: #{fc_model_forward.1} parent=1 // pred_check
      _
    $region15: #{fc_model_forward.1} parent=1 // pred_check_branch
      %32 = sbr.rel (0) target = $region17
    $region16: #{fc_model_forward.1} parent=1 // pred_region
      _
    $region17: #{fc_model_forward.1} parent=1 // pred_fallthru
      _
    // Predicated region
    $region18: #{fc_model_forward.1} parent=1 // pred_check
      _
    $region19: #{fc_model_forward.1} parent=1 // pred_check_branch
      %34 = sbr.rel (0) target = $region21
    $region20: #{fc_model_forward.1} parent=1 // pred_region
      _
    $region21: #{fc_model_forward.1} parent=1 // pred_fallthru
      _
    // Predicated region
    $region22: #{fc_model_forward.1} parent=1 // pred_check
      _
    $region23: #{fc_model_forward.1} parent=1 // pred_check_branch
      %36 = sbr.rel (0) target = $region25
    $region24: #{fc_model_forward.1} parent=1 // pred_region
      %s38 = ssub.s32 2048, 2048
      %39 = vsyncadd [#allocation6], %s38
      %s40 = sshll.u32 [#allocation5], 4
      %s41 = int_to_ptr.vmem [resolvable:$true] %s40
      %46 = dma.hbm_to_vmem [thread:$0]  %s5, 2048, %s41, [#allocation6], 128, 128, 8
    $region25: #{fc_model_forward.1} parent=1 // pred_fallthru
      _
    // Predicated region
    $region26: #{fc_model_forward.1} parent=1 // pred_check
      _
    $region27: #{fc_model_forward.1} parent=1 // pred_check_branch
      %48 = sbr.rel (0) target = $region29
    $region28: #{fc_model_forward.1} parent=1 // pred_region
      _
    $region29: #{fc_model_forward.1} parent=1 // pred_fallthru
      _
    // Predicated region
    $region30: #{fc_model_forward.1} parent=1 // pred_check
      _
    $region31: #{fc_model_forward.1} parent=1 // pred_check_branch
      %50 = sbr.rel (0) target = $region33
    $region32: #{fc_model_forward.1} parent=1 // pred_region
      _
    $region33: #{fc_model_forward.1} parent=1 // pred_fallthru
      _
    // Predicated region
    $region34: #{fc_model_forward.1} parent=1 // pred_check
      _
    $region35: #{fc_model_forward.1} parent=1 // pred_check_branch
      %52 = sbr.rel (0) target = $region37
    $region36: #{fc_model_forward.1} parent=1 // pred_region
      _
    $region37: #{fc_model_forward.1} parent=1 // pred_fallthru
      _
    // Predicated region
    $region38: #{fc_model_forward.1} parent=1 // pred_check
      _
    $region39: #{fc_model_forward.1} parent=1 // pred_check_branch
      %54 = sbr.rel (0) target = $region41
    $region40: #{fc_model_forward.1} parent=1 // pred_region
      %55 = dma.done [#allocation3], 128
    $region41: #{fc_model_forward.1} parent=1 // pred_fallthru
      _
    // Predicated region
    $region42: #{fc_model_forward.1} parent=1 // pred_check
      _
    $region43: #{fc_model_forward.1} parent=1 // pred_check_branch
      %57 = sbr.rel (0) target = $region45
    $region44: #{fc_model_forward.1} parent=1 // pred_region
      %58 = dma.done [#allocation6], 2048
    $region45: #{fc_model_forward.1} parent=1 // pred_fallthru
      _
    %v59 = vld [vmem:[#allocation2] sm:$0xff]
    %v60 = vld [vmem:[%s1] sm:$0xff]
    %v61 = vld [vmem:[%s1 + $0x8] sm:$0xff]
    %v62 = vld [vmem:[%s1 + $0x10] sm:$0xff]
    %v63 = vld [vmem:[%s2] sm:$0x1]
    %v65 = vlaneseq
    %v66 = vshrl.u32 %v65, 7
    %v67 = vsub.s32 0, %v66
    %v68 = vrot.slane %v63, %v67
    %vm70 = vcmask 195584
    %v72 = vsel %vm70, %v59, 0
    %74 = vmatprep.subr.mxu0 0.0
    %75 = vmatpush1.msra.mxu0 %v60
    %76 = vmatprep.subr.mxu0 0.0
    %77 = vmatpush1.msra.mxu0 %v61
    %78 = vmatprep.subr.mxu0 0.0
    %79 = vmatpush1.msra.mxu0 %v62
    %80 = vmatprep.subr.mxu0 0.0
    %81 = vmatpush1.msra.mxu0 0.0
    %82 = vmatprep.subr.mxu0 0.0
    %83 = vmatpush1.msra.mxu0 0.0
    %84 = vmatprep.subr.mxu0 0.0
    %85 = vmatpush1.msra.mxu0 0.0
    %86 = vmatprep.subr.mxu0 0.0
    %87 = vmatpush1.msra.mxu0 0.0
    %88 = vmatprep.subr.mxu0 0.0
    %89 = vmatpush1.msra.mxu0 0.0
    %90 = vmatprep.subr.mxu0 0.0
    %91 = vmatpush1.msra.mxu0 0.0
    %92 = vmatprep.subr.mxu0 0.0
    %93 = vmatpush1.msra.mxu0 0.0
    %94 = vmatprep.subr.mxu0 0.0
    %95 = vmatpush1.msra.mxu0 0.0
    %96 = vmatprep.subr.mxu0 0.0
    %97 = vmatpush1.msra.mxu0 0.0
    %98 = vmatprep.subr.mxu0 0.0
    %99 = vmatpush1.msra.mxu0 0.0
    %100 = vmatprep.subr.mxu0 0.0
    %101 = vmatpush1.msra.mxu0 0.0
    %102 = vmatprep.subr.mxu0 0.0
    %103 = vmatpush1.msra.mxu0 0.0
    %104 = vmatprep.subr.mxu0 0.0
    %105 = vmatpush1.msra.mxu0 0.0
    %106 = vmatprep.subr.mxu0 0.0
    %107 = vmatpush1.msra.mxu0 0.0
    %108 = vmatprep.subr.mxu0 0.0
    %109 = vmatpush1.msra.mxu0 0.0
    %110 = vmatprep.subr.mxu0 0.0
    %111 = vmatpush1.msra.mxu0 0.0
    %112 = vmatprep.subr.mxu0 0.0
    %113 = vmatpush1.msra.mxu0 0.0
    %114 = vmatprep.subr.mxu0 0.0
    %115 = vmatpush1.msra.mxu0 0.0
    %116 = vmatprep.subr.mxu0 0.0
    %117 = vmatpush1.msra.mxu0 0.0
    %118 = vmatprep.subr.mxu0 0.0
    %119 = vmatpush1.msra.mxu0 0.0
    %120 = vmatprep.subr.mxu0 0.0
    %121 = vmatpush1.msra.mxu0 0.0
    %122 = vmatprep.subr.mxu0 0.0
    %123 = vmatpush1.msra.mxu0 0.0
    %124 = vmatprep.subr.mxu0 0.0
    %125 = vmatpush1.msra.mxu0 0.0
    %126 = vmatprep.subr.mxu0 0.0
    %127 = vmatpush1.msra.mxu0 0.0
    %128 = vmatprep.subr.mxu0 0.0
    %129 = vmatpush1.msra.mxu0 0.0
    %130 = vmatprep.subr.mxu0 0.0
    %131 = vmatpush1.msra.mxu0 0.0
    %132 = vmatprep.subr.mxu0 0.0
    %133 = vmatpush1.msra.mxu0 0.0
    %134 = vmatprep.subr.mxu0 0.0
    %135 = vmatpush1.msra.mxu0 0.0
    %136 = vmatprep.subr.mxu0 0.0
    %137 = vmatpush1.msra.mxu0 0.0
    %138 = vmatprep.mubr.f32.mxu0 0.0
    %139 = vmatmul.mubr.f32.gmra.mrb[0].mxu0 %v72
    %v140 = vpop.f32.mrb[0].mxu0
    %v141 = vadd.f32 %v68, %v140
    %v142 = vpop.f32.mrb[0].mxu0
    %143 = vdwg.mxu0
    %v144 = vmax.f32 %v141, 0.0
    %v145 = vld [vmem:[%s3] sm:$0xff]
    %v146 = vld [vmem:[%s3 + $0x8] sm:$0xff]
    %v147 = vld [vmem:[%s3 + $0x10] sm:$0xff]
    %v148 = vld [vmem:[%s3 + $0x18] sm:$0xff]
    %v149 = vld [vmem:[%s3 + $0x20] sm:$0xff]
    %v150 = vld [vmem:[%s3 + $0x28] sm:$0xff]
    %v151 = vld [vmem:[%s3 + $0x30] sm:$0xff]
    %v152 = vld [vmem:[%s3 + $0x38] sm:$0xff]
    %v153 = vld [vmem:[%s3 + $0x40] sm:$0xff]
    %v154 = vld [vmem:[%s3 + $0x48] sm:$0xff]
    %v155 = vld [vmem:[%s3 + $0x50] sm:$0xff]
    %v156 = vld [vmem:[%s3 + $0x58] sm:$0xff]
    %v157 = vld [vmem:[%s3 + $0x60] sm:$0xff]
    %v158 = vld [vmem:[%s3 + $0x68] sm:$0xff]
    %v159 = vld [vmem:[%s3 + $0x70] sm:$0xff]
    %v160 = vld [vmem:[%s3 + $0x78] sm:$0xff]
    %v161 = vld [vmem:[%s4] sm:$0x1]
    %v163 = vlaneseq
    %v164 = vshrl.u32 %v163, 7
    %v165 = vsub.s32 0, %v164
    %v166 = vrot.slane %v161, %v165
    %168 = vmatprep.subr.mxu0 0.0
    %169 = vmatpush1.msra.mxu0 %v145
    %170 = vmatprep.subr.mxu0 0.0
    %171 = vmatpush1.msra.mxu0 %v146
    %172 = vmatprep.subr.mxu0 0.0
    %173 = vmatpush1.msra.mxu0 %v147
    %174 = vmatprep.subr.mxu0 0.0
    %175 = vmatpush1.msra.mxu0 %v148
    %176 = vmatprep.subr.mxu0 0.0
    %177 = vmatpush1.msra.mxu0 %v149
    %178 = vmatprep.subr.mxu0 0.0
    %179 = vmatpush1.msra.mxu0 %v150
    %180 = vmatprep.subr.mxu0 0.0
    %181 = vmatpush1.msra.mxu0 %v151
    %182 = vmatprep.subr.mxu0 0.0
    %183 = vmatpush1.msra.mxu0 %v152
    %184 = vmatprep.subr.mxu0 0.0
    %185 = vmatpush1.msra.mxu0 %v153
    %186 = vmatprep.subr.mxu0 0.0
    %187 = vmatpush1.msra.mxu0 %v154
    %188 = vmatprep.subr.mxu0 0.0
    %189 = vmatpush1.msra.mxu0 %v155
    %190 = vmatprep.subr.mxu0 0.0
    %191 = vmatpush1.msra.mxu0 %v156
    %192 = vmatprep.subr.mxu0 0.0
    %193 = vmatpush1.msra.mxu0 %v157
    %194 = vmatprep.subr.mxu0 0.0
    %195 = vmatpush1.msra.mxu0 %v158
    %196 = vmatprep.subr.mxu0 0.0
    %197 = vmatpush1.msra.mxu0 %v159
    %198 = vmatprep.subr.mxu0 0.0
    %199 = vmatpush1.msra.mxu0 %v160
    %200 = vmatprep.subr.mxu0 0.0
    %201 = vmatpush1.msra.mxu0 0.0
    %202 = vmatprep.subr.mxu0 0.0
    %203 = vmatpush1.msra.mxu0 0.0
    %204 = vmatprep.subr.mxu0 0.0
    %205 = vmatpush1.msra.mxu0 0.0
    %206 = vmatprep.subr.mxu0 0.0
    %207 = vmatpush1.msra.mxu0 0.0
    %208 = vmatprep.subr.mxu0 0.0
    %209 = vmatpush1.msra.mxu0 0.0
    %210 = vmatprep.subr.mxu0 0.0
    %211 = vmatpush1.msra.mxu0 0.0
    %212 = vmatprep.subr.mxu0 0.0
    %213 = vmatpush1.msra.mxu0 0.0
    %214 = vmatprep.subr.mxu0 0.0
    %215 = vmatpush1.msra.mxu0 0.0
    %216 = vmatprep.subr.mxu0 0.0
    %217 = vmatpush1.msra.mxu0 0.0
    %218 = vmatprep.subr.mxu0 0.0
    %219 = vmatpush1.msra.mxu0 0.0
    %220 = vmatprep.subr.mxu0 0.0
    %221 = vmatpush1.msra.mxu0 0.0
    %222 = vmatprep.subr.mxu0 0.0
    %223 = vmatpush1.msra.mxu0 0.0
    %224 = vmatprep.subr.mxu0 0.0
    %225 = vmatpush1.msra.mxu0 0.0
    %226 = vmatprep.subr.mxu0 0.0
    %227 = vmatpush1.msra.mxu0 0.0
    %228 = vmatprep.subr.mxu0 0.0
    %229 = vmatpush1.msra.mxu0 0.0
    %230 = vmatprep.subr.mxu0 0.0
    %231 = vmatpush1.msra.mxu0 0.0
    %232 = vmatprep.mubr.f32.mxu0 0.0
    %233 = vmatmul.mubr.f32.gmra.mrb[0].mxu0 %v144
    %v234 = vpop.f32.mrb[0].mxu0
    %v235 = vadd.f32 %v166, %v234
    %v236 = vpop.f32.mrb[0].mxu0
    %237 = vdwg.mxu0
    %v238 = vmax.f32 %v235, 0.0
    %v239 = vld [vmem:[#allocation5] sm:$0xff]
    %v240 = vld [vmem:[#allocation5 + $0x8] sm:$0xff]
    %v241 = vld [vmem:[#allocation5 + $0x10] sm:$0xff]
    %v242 = vld [vmem:[#allocation5 + $0x18] sm:$0xff]
    %v243 = vld [vmem:[#allocation5 + $0x20] sm:$0xff]
    %v244 = vld [vmem:[#allocation5 + $0x28] sm:$0xff]
    %v245 = vld [vmem:[#allocation5 + $0x30] sm:$0xff]
    %v246 = vld [vmem:[#allocation5 + $0x38] sm:$0xff]
    %v247 = vld [vmem:[#allocation5 + $0x40] sm:$0xff]
    %v248 = vld [vmem:[#allocation5 + $0x48] sm:$0xff]
    %v249 = vld [vmem:[#allocation5 + $0x50] sm:$0xff]
    %v250 = vld [vmem:[#allocation5 + $0x58] sm:$0xff]
    %v251 = vld [vmem:[#allocation5 + $0x60] sm:$0xff]
    %v252 = vld [vmem:[#allocation5 + $0x68] sm:$0xff]
    %v253 = vld [vmem:[#allocation5 + $0x70] sm:$0xff]
    %v254 = vld [vmem:[#allocation5 + $0x78] sm:$0xff]
    %v255 = vld [vmem:[%s6] sm:$0x1]
    %v257 = vlaneseq
    %v258 = vshrl.u32 %v257, 7
    %v259 = vsub.s32 0, %v258
    %v260 = vrot.slane %v255, %v259
    %262 = vmatprep.subr.mxu0 0.0
    %263 = vmatpush1.msra.mxu0 %v239
    %264 = vmatprep.subr.mxu0 0.0
    %265 = vmatpush1.msra.mxu0 %v240
    %266 = vmatprep.subr.mxu0 0.0
    %267 = vmatpush1.msra.mxu0 %v241
    %268 = vmatprep.subr.mxu0 0.0
    %269 = vmatpush1.msra.mxu0 %v242
    %270 = vmatprep.subr.mxu0 0.0
    %271 = vmatpush1.msra.mxu0 %v243
    %272 = vmatprep.subr.mxu0 0.0
    %273 = vmatpush1.msra.mxu0 %v244
    %274 = vmatprep.subr.mxu0 0.0
    %275 = vmatpush1.msra.mxu0 %v245
    %276 = vmatprep.subr.mxu0 0.0
    %277 = vmatpush1.msra.mxu0 %v246
    %278 = vmatprep.subr.mxu0 0.0
    %279 = vmatpush1.msra.mxu0 %v247
    %280 = vmatprep.subr.mxu0 0.0
    %281 = vmatpush1.msra.mxu0 %v248
    %282 = vmatprep.subr.mxu0 0.0
    %283 = vmatpush1.msra.mxu0 %v249
    %284 = vmatprep.subr.mxu0 0.0
    %285 = vmatpush1.msra.mxu0 %v250
    %286 = vmatprep.subr.mxu0 0.0
    %287 = vmatpush1.msra.mxu0 %v251
    %288 = vmatprep.subr.mxu0 0.0
    %289 = vmatpush1.msra.mxu0 %v252
    %290 = vmatprep.subr.mxu0 0.0
    %291 = vmatpush1.msra.mxu0 %v253
    %292 = vmatprep.subr.mxu0 0.0
    %293 = vmatpush1.msra.mxu0 %v254
    %294 = vmatprep.subr.mxu0 0.0
    %295 = vmatpush1.msra.mxu0 0.0
    %296 = vmatprep.subr.mxu0 0.0
    %297 = vmatpush1.msra.mxu0 0.0
    %298 = vmatprep.subr.mxu0 0.0
    %299 = vmatpush1.msra.mxu0 0.0
    %300 = vmatprep.subr.mxu0 0.0
    %301 = vmatpush1.msra.mxu0 0.0
    %302 = vmatprep.subr.mxu0 0.0
    %303 = vmatpush1.msra.mxu0 0.0
    %304 = vmatprep.subr.mxu0 0.0
    %305 = vmatpush1.msra.mxu0 0.0
    %306 = vmatprep.subr.mxu0 0.0
    %307 = vmatpush1.msra.mxu0 0.0
    %308 = vmatprep.subr.mxu0 0.0
    %309 = vmatpush1.msra.mxu0 0.0
    %310 = vmatprep.subr.mxu0 0.0
    %311 = vmatpush1.msra.mxu0 0.0
    %312 = vmatprep.subr.mxu0 0.0
    %313 = vmatpush1.msra.mxu0 0.0
    %314 = vmatprep.subr.mxu0 0.0
    %315 = vmatpush1.msra.mxu0 0.0
    %316 = vmatprep.subr.mxu0 0.0
    %317 = vmatpush1.msra.mxu0 0.0
    %318 = vmatprep.subr.mxu0 0.0
    %319 = vmatpush1.msra.mxu0 0.0
    %320 = vmatprep.subr.mxu0 0.0
    %321 = vmatpush1.msra.mxu0 0.0
    %322 = vmatprep.subr.mxu0 0.0
    %323 = vmatpush1.msra.mxu0 0.0
    %324 = vmatprep.subr.mxu0 0.0
    %325 = vmatpush1.msra.mxu0 0.0
    %326 = vmatprep.mubr.f32.mxu0 0.0
    %327 = vmatmul.mubr.f32.gmra.mrb[0].mxu0 %v238
    %v328 = vpop.f32.mrb[0].mxu0
    %v329 = vadd.f32 %v260, %v328
    %v330 = vpop.f32.mrb[0].mxu0
    %331 = vdwg.mxu0
    %v332 = vmax.f32 %v329, 0.0
    %v333 = vld [vmem:[%s7] sm:$0xff]
    %v334 = vld [vmem:[%s7 + $0x8] sm:$0xff]
    %v335 = vld [vmem:[%s7 + $0x10] sm:$0xff]
    %v336 = vld [vmem:[%s7 + $0x18] sm:$0xff]
    %v337 = vld [vmem:[%s7 + $0x20] sm:$0xff]
    %v338 = vld [vmem:[%s7 + $0x28] sm:$0xff]
    %v339 = vld [vmem:[%s7 + $0x30] sm:$0xff]
    %v340 = vld [vmem:[%s7 + $0x38] sm:$0xff]
    %v341 = vld [vmem:[%s7 + $0x40] sm:$0xff]
    %v342 = vld [vmem:[%s7 + $0x48] sm:$0xff]
    %v343 = vld [vmem:[%s7 + $0x50] sm:$0xff]
    %v344 = vld [vmem:[%s7 + $0x58] sm:$0xff]
    %v345 = vld [vmem:[%s7 + $0x60] sm:$0xff]
    %v346 = vld [vmem:[%s7 + $0x68] sm:$0xff]
    %v347 = vld [vmem:[%s7 + $0x70] sm:$0xff]
    %v348 = vld [vmem:[%s7 + $0x78] sm:$0xff]
    %v349 = vld [vmem:[%s8] sm:$0x1]
    %v351 = vlaneseq
    %v352 = vshrl.u32 %v351, 7
    %v353 = vsub.s32 0, %v352
    %v354 = vrot.slane %v349, %v353
    %356 = vmatprep.subr.mxu0 0.0
    %357 = vmatpush1.msra.mxu0 %v333
    %358 = vmatprep.subr.mxu0 0.0
    %359 = vmatpush1.msra.mxu0 %v334
    %360 = vmatprep.subr.mxu0 0.0
    %361 = vmatpush1.msra.mxu0 %v335
    %362 = vmatprep.subr.mxu0 0.0
    %363 = vmatpush1.msra.mxu0 %v336
    %364 = vmatprep.subr.mxu0 0.0
    %365 = vmatpush1.msra.mxu0 %v337
    %366 = vmatprep.subr.mxu0 0.0
    %367 = vmatpush1.msra.mxu0 %v338
    %368 = vmatprep.subr.mxu0 0.0
    %369 = vmatpush1.msra.mxu0 %v339
    %370 = vmatprep.subr.mxu0 0.0
    %371 = vmatpush1.msra.mxu0 %v340
    %372 = vmatprep.subr.mxu0 0.0
    %373 = vmatpush1.msra.mxu0 %v341
    %374 = vmatprep.subr.mxu0 0.0
    %375 = vmatpush1.msra.mxu0 %v342
    %376 = vmatprep.subr.mxu0 0.0
    %377 = vmatpush1.msra.mxu0 %v343
    %378 = vmatprep.subr.mxu0 0.0
    %379 = vmatpush1.msra.mxu0 %v344
    %380 = vmatprep.subr.mxu0 0.0
    %381 = vmatpush1.msra.mxu0 %v345
    %382 = vmatprep.subr.mxu0 0.0
    %383 = vmatpush1.msra.mxu0 %v346
    %384 = vmatprep.subr.mxu0 0.0
    %385 = vmatpush1.msra.mxu0 %v347
    %386 = vmatprep.subr.mxu0 0.0
    %387 = vmatpush1.msra.mxu0 %v348
    %388 = vmatprep.subr.mxu0 0.0
    %389 = vmatpush1.msra.mxu0 0.0
    %390 = vmatprep.subr.mxu0 0.0
    %391 = vmatpush1.msra.mxu0 0.0
    %392 = vmatprep.subr.mxu0 0.0
    %393 = vmatpush1.msra.mxu0 0.0
    %394 = vmatprep.subr.mxu0 0.0
    %395 = vmatpush1.msra.mxu0 0.0
    %396 = vmatprep.subr.mxu0 0.0
    %397 = vmatpush1.msra.mxu0 0.0
    %398 = vmatprep.subr.mxu0 0.0
    %399 = vmatpush1.msra.mxu0 0.0
    %400 = vmatprep.subr.mxu0 0.0
    %401 = vmatpush1.msra.mxu0 0.0
    %402 = vmatprep.subr.mxu0 0.0
    %403 = vmatpush1.msra.mxu0 0.0
    %404 = vmatprep.subr.mxu0 0.0
    %405 = vmatpush1.msra.mxu0 0.0
    %406 = vmatprep.subr.mxu0 0.0
    %407 = vmatpush1.msra.mxu0 0.0
    %408 = vmatprep.subr.mxu0 0.0
    %409 = vmatpush1.msra.mxu0 0.0
    %410 = vmatprep.subr.mxu0 0.0
    %411 = vmatpush1.msra.mxu0 0.0
    %412 = vmatprep.subr.mxu0 0.0
    %413 = vmatpush1.msra.mxu0 0.0
    %414 = vmatprep.subr.mxu0 0.0
    %415 = vmatpush1.msra.mxu0 0.0
    %416 = vmatprep.subr.mxu0 0.0
    %417 = vmatpush1.msra.mxu0 0.0
    %418 = vmatprep.subr.mxu0 0.0
    %419 = vmatpush1.msra.mxu0 0.0
    %420 = vmatprep.mubr.f32.mxu0 0.0
    %421 = vmatmul.mubr.f32.gmra.mrb[0].mxu0 %v332
    %v422 = vpop.f32.mrb[0].mxu0
    %v423 = vadd.f32 %v354, %v422
    %v424 = vpop.f32.mrb[0].mxu0
    %425 = vdwg.mxu0
    %vm426 = vcmask 130048
    %427 = vst.msk [vmem:[#allocation7] sm:$0xff] %vm426, %v423
    // Predicated region
    $region46: #{fc_model_forward.1} parent=1 // pred_check
      _
    $region47: #{fc_model_forward.1} parent=1 // pred_check_branch
      %429 = sbr.rel (0) target = $region49
    $region48: #{fc_model_forward.1} parent=1 // pred_region
      %s431 = ssub.s32 128, 128
      %432 = vsyncadd [#allocation4], %s431
      %s434 = sshll.u32 [#allocation7], 4
      %s435 = int_to_ptr.vmem [resolvable:$true] %s434
      %437 = dma.vmem_to_hbm [thread:$0]  %s435, 128, %s9, [#allocation4]
    $region49: #{fc_model_forward.1} parent=1 // pred_fallthru
      _
    // Predicated region
    $region50: #{fc_model_forward.1} parent=1 // pred_check
      _
    $region51: #{fc_model_forward.1} parent=1 // pred_check_branch
      %439 = sbr.rel (0) target = $region53
    $region52: #{fc_model_forward.1} parent=1 // pred_region
      %440 = dma.done [#allocation4], 128
    $region53: #{fc_model_forward.1} parent=1 // pred_fallthru
      _
    %441 = vsyncpa [#allocation3], 1
    %442 = vsyncpa [#allocation6], 1
    %443 = vsyncpa [#allocation4], 1

</llo_original>
